<compile_context>
chip_gen: v7x
topology: tpu7x:2x2x1
jax: 0.10.0
libtpu: 0.0.40
codegen_flags: <defaults>
</compile_context>

<pallas_src>
import jax
import jax.numpy as jnp
from jax.experimental import pallas as pl
from jax.experimental.pallas import tpu as pltpu


def _round_up(n, m):
    return ((n + m - 1) // m) * m


def mlp_kernel(x_ref, w1_ref, b1_ref, w2_ref, b2_ref, o_ref):
    # Upcast streamed operands to f32 for all elementwise/accumulate work.
    # (HBM traffic stays in the streamed dtype; v5e has no bf16 VPU.)
    x = x_ref[...].astype(jnp.float32)      # (TILE_N, F)
    w1 = w1_ref[...].astype(jnp.float32)    # (F, H_pad)

    # ----- Layer 1 on the VPU: K = F is tiny, skip the MXU round-trip. -----
    # h = x @ W1 + b1 expressed as F broadcast FMAs (F is static, unrolled).
    h = b1_ref[...]                          # (1, H_pad), f32, broadcasts over rows
    for k in range(x.shape[1]):
        h = h + x[:, k:k + 1] * w1[k:k + 1, :]
    h = jnp.maximum(h, 0.0)                  # ReLU, (TILE_N, H_pad), f32

    # ----- Layer 2 on the MXU: dense 128x128 matmul, f32 accumulation. -----
    # Feed the MXU activations in the weight dtype (bf16 on v6e/v7x), keep the
    # bias add and the accumulator in f32.
    out = jnp.dot(h.astype(w2_ref.dtype), w2_ref[...],
                  preferred_element_type=jnp.float32)
    o_ref[...] = (out + b2_ref[...]).astype(o_ref.dtype)


def net_forward(x, w1, b1, w2, b2, *, tile_n=512, stream_dtype=None):
    """Fused forward pass of Net as a batch-tiled, lane-dense Pallas kernel.

    x : (N, F)   w1 : (F, H)   b1 : (1, H)   w2 : (H, O)   b2 : (1, O)
    stream_dtype: optional dtype (e.g. jnp.bfloat16) for the streamed x/W1/W2
                  operands; accumulation and biases stay f32.
    Returns (N, O) float32.
    """
    n, f = x.shape
    h = w1.shape[1]
    o = w2.shape[1]

    # Lane-dense padding: hidden / output widths padded to full 128-lane vregs.
    hp = _round_up(h, 128)
    op = _round_up(o, 128)

    # Batch tiling: multiples of 8 sublanes; >=512 rows when the batch is large
    # (amortizes the ~0.35us per-grid-step overhead), single tile otherwise.
    tn = min(tile_n, _round_up(n, 8))
    n_pad = _round_up(n, tn)

    if stream_dtype is not None:
        x = x.astype(stream_dtype)
        w1 = w1.astype(stream_dtype)
        w2 = w2.astype(stream_dtype)

    # Zero-padding keeps semantics exact: padded hidden units are relu(0)=0 and
    # padded W2 rows/cols are 0, so they contribute nothing to the real outputs.
    xp = jnp.zeros((n_pad, f), x.dtype).at[:n, :].set(x)
    w1p = jnp.zeros((f, hp), w1.dtype).at[:, :h].set(w1)
    b1p = jnp.zeros((1, hp), jnp.float32).at[:, :h].set(b1.astype(jnp.float32))
    w2p = jnp.zeros((hp, op), w2.dtype).at[:h, :o].set(w2)
    b2p = jnp.zeros((1, op), jnp.float32).at[:, :o].set(b2.astype(jnp.float32))

    out_padded = pl.pallas_call(
        mlp_kernel,
        out_shape=jax.ShapeDtypeStruct((n_pad, op), jnp.float32),
        grid_spec=pltpu.PrefetchScalarGridSpec(
            num_scalar_prefetch=0,
            grid=(n_pad // tn,),
            in_specs=[
                # Streamed batch tile (auto double-buffered by BlockSpec).
                pl.BlockSpec((tn, f), lambda i: (i, 0)),
                # Weights / biases: constant index_map -> VMEM-resident.
                pl.BlockSpec((f, hp), lambda i: (0, 0)),
                pl.BlockSpec((1, hp), lambda i: (0, 0)),
                pl.BlockSpec((hp, op), lambda i: (0, 0)),
                pl.BlockSpec((1, op), lambda i: (0, 0)),
            ],
            out_specs=pl.BlockSpec((tn, op), lambda i: (i, 0)),
        ),
        compiler_params=pltpu.CompilerParams(
            # Independent batch tiles -> shard across TensorCores on v7x.
            dimension_semantics=("parallel",),
        ),
    )(xp, w1p, b1p, w2p, b2p)

    # Wrapper-side slice back to the logical shape (layout plumbing is free
    # relative to per-iteration masked partial stores in the kernel).
    return out_padded[:n, :o]


def init_linear_params(key, in_features, out_features):
    """Deterministic init mimicking torch.nn.Linear (uniform +/- 1/sqrt(in))."""
    kw, kb = jax.random.split(key)
    bound = 1.0 / (in_features ** 0.5)
    # stored as (in, out) so the kernel does x @ W (== x @ W_torch.T)
    w = jax.random.uniform(kw, (in_features, out_features), jnp.float32,
                           minval=-bound, maxval=bound)
    b = jax.random.uniform(kb, (1, out_features), jnp.float32,
                           minval=-bound, maxval=bound)
    return w, b


if __name__ == "__main__":
    # Net(n_feature=2, n_hidden=10, n_output=2) as in the original script.
    n_feature, n_hidden, n_output = 2, 10, 2
    batch_half = 100  # 100 points per class, like the original script

    key = jax.random.PRNGKey(0)
    k_d0, k_d1, k_l1, k_l2 = jax.random.split(key, 4)

    # Synthetic two-class data like the script: N(+2, 1) and N(-2, 1).
    n_data = jnp.ones((batch_half, n_feature), jnp.float32)
    x0 = 2.0 * n_data + jax.random.normal(k_d0, (batch_half, n_feature), jnp.float32)
    x1 = -2.0 * n_data + jax.random.normal(k_d1, (batch_half, n_feature), jnp.float32)
    x = jnp.concatenate([x0, x1], axis=0).astype(jnp.float32)  # (200, 2)

    w1, b1 = init_linear_params(k_l1, n_feature, n_hidden)
    w2, b2 = init_linear_params(k_l2, n_hidden, n_output)

    # Run the kernel with bf16 streaming (the v6e/v7x-recommended configuration).
    out = net_forward(x, w1, b1, w2, b2, stream_dtype=jnp.bfloat16)
    out = jax.block_until_ready(out)

    # Pure-JAX reference mirroring the kernel's rounding points:
    # operands rounded to bf16 at the boundary, all math accumulated in f32,
    # activations fed to the second matmul in bf16.
    f32 = jnp.float32
    xr = x.astype(jnp.bfloat16).astype(f32)
    w1r = w1.astype(jnp.bfloat16).astype(f32)
    w2r = w2.astype(jnp.bfloat16).astype(f32)
    hidden = jnp.maximum(
        jnp.dot(xr, w1r, precision=jax.lax.Precision.HIGHEST) + b1, 0.0)
    hidden = hidden.astype(jnp.bfloat16).astype(f32)
    ref = jnp.dot(hidden, w2r, precision=jax.lax.Precision.HIGHEST) + b2

    assert out.shape == (2 * batch_half, n_output)
    assert jnp.allclose(out, ref, atol=5e-3, rtol=5e-3), \
        float(jnp.max(jnp.abs(out - ref)))

    print("KERNEL_OK")
</pallas_src>

<mosaic_0001>
module attributes {stable_mosaic.version = 11 : i64} {
  func.func @mlp_kernel(%arg0: i32, %arg1: memref<200x2xbf16, #tpu.memory_space<vmem>>, %arg2: memref<2x128xbf16, #tpu.memory_space<vmem>>, %arg3: memref<1x128xf32, #tpu.memory_space<vmem>>, %arg4: memref<128x128xbf16, #tpu.memory_space<vmem>>, %arg5: memref<1x128xf32, #tpu.memory_space<vmem>>, %arg6: memref<200x128xf32, #tpu.memory_space<vmem>>) attributes {dimension_semantics = [#tpu.dimension_semantics<parallel>], iteration_bounds = array<i64: 1>, scalar_prefetch = 0 : i64, scratch_operands = 0 : i64, tpu.core_type = #tpu.core_type<tc>, window_params = [{transform_indices = @transform_0, window_bounds = array<i64: 200, 2>}, {pipeline_mode = #tpu.pipeline_mode<synchronous>, transform_indices = @transform_1, window_bounds = array<i64: 2, 128>}, {pipeline_mode = #tpu.pipeline_mode<synchronous>, transform_indices = @transform_2, window_bounds = array<i64: 1, 128>}, {pipeline_mode = #tpu.pipeline_mode<synchronous>, transform_indices = @transform_3, window_bounds = array<i64: 128, 128>}, {pipeline_mode = #tpu.pipeline_mode<synchronous>, transform_indices = @transform_4, window_bounds = array<i64: 1, 128>}, {transform_indices = @transform_5, window_bounds = array<i64: 200, 128>}]} {
    %c0 = arith.constant 0 : index
    %c0_0 = arith.constant 0 : index
    %0 = vector.load %arg1[%c0, %c0_0] : memref<200x2xbf16, #tpu.memory_space<vmem>>, vector<200x2xbf16>
    %1 = arith.extf %0 : vector<200x2xbf16> to vector<200x2xf32>
    %c0_1 = arith.constant 0 : index
    %c0_2 = arith.constant 0 : index
    %2 = vector.load %arg2[%c0_1, %c0_2] : memref<2x128xbf16, #tpu.memory_space<vmem>>, vector<2x128xbf16>
    %3 = arith.extf %2 : vector<2x128xbf16> to vector<2x128xf32>
    %c0_3 = arith.constant 0 : index
    %c0_4 = arith.constant 0 : index
    %4 = vector.load %arg3[%c0_3, %c0_4] : memref<1x128xf32, #tpu.memory_space<vmem>>, vector<1x128xf32>
    %5 = vector.extract_strided_slice %1 {offsets = [0, 0], sizes = [200, 1], strides = [1, 1]} : vector<200x2xf32> to vector<200x1xf32>
    %6 = vector.extract_strided_slice %3 {offsets = [0, 0], sizes = [1, 128], strides = [1, 1]} : vector<2x128xf32> to vector<1x128xf32>
    %7 = vector.broadcast %5 : vector<200x1xf32> to vector<200x128xf32>
    %8 = vector.broadcast %6 : vector<1x128xf32> to vector<200x128xf32>
    %9 = arith.mulf %7, %8 : vector<200x128xf32>
    %10 = vector.broadcast %4 : vector<1x128xf32> to vector<200x128xf32>
    %11 = arith.addf %10, %9 : vector<200x128xf32>
    %12 = vector.extract_strided_slice %1 {offsets = [0, 1], sizes = [200, 1], strides = [1, 1]} : vector<200x2xf32> to vector<200x1xf32>
    %13 = vector.extract_strided_slice %3 {offsets = [1, 0], sizes = [1, 128], strides = [1, 1]} : vector<2x128xf32> to vector<1x128xf32>
    %14 = vector.broadcast %12 : vector<200x1xf32> to vector<200x128xf32>
    %15 = vector.broadcast %13 : vector<1x128xf32> to vector<200x128xf32>
    %16 = arith.mulf %14, %15 : vector<200x128xf32>
    %17 = arith.addf %11, %16 : vector<200x128xf32>
    %cst = arith.constant 0.000000e+00 : f32
    %18 = vector.broadcast %cst : f32 to vector<200x128xf32>
    %19 = arith.maximumf %17, %18 : vector<200x128xf32>
    %20 = arith.truncf %19 : vector<200x128xf32> to vector<200x128xbf16>
    %c0_5 = arith.constant 0 : index
    %c0_6 = arith.constant 0 : index
    %21 = vector.load %arg4[%c0_5, %c0_6] : memref<128x128xbf16, #tpu.memory_space<vmem>>, vector<128x128xbf16>
    %cst_7 = arith.constant dense<0.000000e+00> : vector<200x128xf32>
    %22 = tpu.matmul %20, %21, %cst_7 {dimension_numbers = #tpu.dot_dimension_numbers<[1], [0], [0], [1], [0, 0, 1, 1], [], []>} : vector<200x128xbf16>, vector<128x128xbf16>, vector<200x128xf32> -> vector<200x128xf32>
    %c0_8 = arith.constant 0 : index
    %c0_9 = arith.constant 0 : index
    %23 = vector.load %arg5[%c0_8, %c0_9] : memref<1x128xf32, #tpu.memory_space<vmem>>, vector<1x128xf32>
    %24 = vector.broadcast %23 : vector<1x128xf32> to vector<200x128xf32>
    %25 = arith.addf %22, %24 : vector<200x128xf32>
    %c0_10 = arith.constant 0 : index
    %c0_11 = arith.constant 0 : index
    %26 = vector.load %arg6[%c0_10, %c0_11] : memref<200x128xf32, #tpu.memory_space<vmem>>, vector<200x128xf32>
    tpu.vector_store %arg6[%c0_10, %c0_11], %25 {strides = array<i32>} : memref<200x128xf32, #tpu.memory_space<vmem>>, vector<200x128xf32>,
    return
  }
  func.func @transform_0(%arg0: i32) -> (i32, i32) {
    %c0_i32 = arith.constant 0 : i32
    %c0_i32_0 = arith.constant 0 : i32
    return %arg0, %c0_i32 : i32, i32
  }
  func.func @transform_1(%arg0: i32) -> (i32, i32) {
    %c0_i32 = arith.constant 0 : i32
    %c0_i32_0 = arith.constant 0 : i32
    %c0_i32_1 = arith.constant 0 : i32
    return %c0_i32, %c0_i32_0 : i32, i32
  }
  func.func @transform_2(%arg0: i32) -> (i32, i32) {
    %c0_i32 = arith.constant 0 : i32
    %c0_i32_0 = arith.constant 0 : i32
    %c0_i32_1 = arith.constant 0 : i32
    return %c0_i32, %c0_i32_0 : i32, i32
  }
  func.func @transform_3(%arg0: i32) -> (i32, i32) {
    %c0_i32 = arith.constant 0 : i32
    %c0_i32_0 = arith.constant 0 : i32
    %c0_i32_1 = arith.constant 0 : i32
    return %c0_i32, %c0_i32_0 : i32, i32
  }
  func.func @transform_4(%arg0: i32) -> (i32, i32) {
    %c0_i32 = arith.constant 0 : i32
    %c0_i32_0 = arith.constant 0 : i32
    %c0_i32_1 = arith.constant 0 : i32
    return %c0_i32, %c0_i32_0 : i32, i32
  }
  func.func @transform_5(%arg0: i32) -> (i32, i32) {
    %c0_i32 = arith.constant 0 : i32
    %c0_i32_0 = arith.constant 0 : i32
    return %arg0, %c0_i32 : i32, i32
  }
}

</mosaic_0001>

<llo_original>
// kernel: tpu_custom_call.1
$region0: #{tpu_custom_call.1}
  #allocation0 [shape = 'u32[]', space=smem, size = 0x4, offset = 0x4, fixed_abs, tag = 'smem constant byte address 0x4 - core index']
  #allocation1 [shape = 'u32[144,128]{1,0:T(1,128)}', space=vmem, size = 0x12000, scoped, tag = 'internal scratch']
  %s0 = inlined_call_operand.vmem [shape: bf16[200,2], index: 0, kind: input, shape index: {}]
  %s1 = inlined_call_operand.vmem [shape: bf16[2,128], index: 1, kind: input, shape index: {}]
  %s2 = inlined_call_operand.vmem [shape: f32[1,128], index: 2, kind: input, shape index: {}]
  %s3 = inlined_call_operand.vmem [shape: bf16[128,128], index: 3, kind: input, shape index: {}]
  %s4 = inlined_call_operand.vmem [shape: f32[1,128], index: 4, kind: input, shape index: {}]
  %s5 = inlined_call_operand.hbm [shape: f32[200,128], index: 5, kind: output, shape index: {}]
  %s6 = sld [smem:[#allocation0]]
  $region30: #{tpu_custom_call.1} parent=0
    _
  %s8 = ssub.s32 1, %s6
  %s9 = scalar_select 0, %s8, %s6
  $region1: #{tpu_custom_call.1} parent=0
    #allocation2 [shape = 'u8[102400]{0}', space=vmem, size = 0x19000, scoped, tag = 'output window, operand 0, single buffered']
    #allocation3 [shape = 's32[1]{0}', space=sflag, size = 0x4, scoped, tag = 'scoped memory for tpu_custom_call.1']
    %10 = vsyncpa [#allocation3], 0
    // Predicated region
    $region2: #{tpu_custom_call.1} parent=1 // pred_check
      _
    $region3: #{tpu_custom_call.1} parent=1 // pred_check_branch
      %12 = sbr.rel (0) target = $region5
    $region4: #{tpu_custom_call.1} parent=1 // pred_region
      _
    $region5: #{tpu_custom_call.1} parent=1 // pred_fallthru
      _
    // Predicated region
    $region6: #{tpu_custom_call.1} parent=1 // pred_check
      _
    $region7: #{tpu_custom_call.1} parent=1 // pred_check_branch
      %14 = sbr.rel (0) target = $region9
    $region8: #{tpu_custom_call.1} parent=1 // pred_region
      _
    $region9: #{tpu_custom_call.1} parent=1 // pred_fallthru
      _
    // Predicated region
    $region10: #{tpu_custom_call.1} parent=1 // pred_check
      _
    $region11: #{tpu_custom_call.1} parent=1 // pred_check_branch
      %16 = sbr.rel (0) target = $region13
    $region12: #{tpu_custom_call.1} parent=1 // pred_region
      _
    $region13: #{tpu_custom_call.1} parent=1 // pred_fallthru
      _
    // Predicated region
    $region14: #{tpu_custom_call.1} parent=1 // pred_check
      _
    $region15: #{tpu_custom_call.1} parent=1 // pred_check_branch
      %18 = sbr.rel (0) target = $region17
    $region16: #{tpu_custom_call.1} parent=1 // pred_region
      _
    $region17: #{tpu_custom_call.1} parent=1 // pred_fallthru
      _
    // Predicated region
    $region18: #{tpu_custom_call.1} parent=1 // pred_check
      _
    $region19: #{tpu_custom_call.1} parent=1 // pred_check_branch
      %20 = sbr.rel (0) target = $region21
    $region20: #{tpu_custom_call.1} parent=1 // pred_region
      _
    $region21: #{tpu_custom_call.1} parent=1 // pred_fallthru
      _
    %v22 = vld [vmem:[%s0] sm:$0xf]
    %v23 = vld [vmem:[%s0 + $0x4] sm:$0xf]
    %v24 = vld [vmem:[%s0 + $0x8] sm:$0xf]
    %v25 = vld [vmem:[%s0 + $0xc] sm:$0xf]
    %v26 = vld [vmem:[%s0 + $0x10] sm:$0xf]
    %v27 = vld [vmem:[%s0 + $0x14] sm:$0xf]
    %v28 = vld [vmem:[%s0 + $0x18] sm:$0xf]
    %v29 = vld [vmem:[%s0 + $0x1c] sm:$0xf]
    %v30 = vld [vmem:[%s0 + $0x20] sm:$0xf]
    %v31 = vld [vmem:[%s0 + $0x24] sm:$0xf]
    %v32 = vld [vmem:[%s0 + $0x28] sm:$0xf]
    %v33 = vld [vmem:[%s0 + $0x2c] sm:$0xf]
    %v34 = vld [vmem:[%s0 + $0x30] sm:$0xf]
    %v35 = vld [vmem:[%s0 + $0x34] sm:$0xf]
    %v36 = vld [vmem:[%s0 + $0x38] sm:$0xf]
    %v37 = vld [vmem:[%s0 + $0x3c] sm:$0xf]
    %v38 = vld [vmem:[%s0 + $0x40] sm:$0xf]
    %v39 = vld [vmem:[%s0 + $0x44] sm:$0xf]
    %v40 = vld [vmem:[%s0 + $0x48] sm:$0xf]
    %v41 = vld [vmem:[%s0 + $0x4c] sm:$0xf]
    %v42 = vld [vmem:[%s0 + $0x50] sm:$0xf]
    %v43 = vld [vmem:[%s0 + $0x54] sm:$0xf]
    %v44 = vld [vmem:[%s0 + $0x58] sm:$0xf]
    %v45 = vld [vmem:[%s0 + $0x5c] sm:$0xf]
    %v46 = vld [vmem:[%s0 + $0x60] sm:$0xf]
    %v47 = vunpack.c.l.bf16 %v22
    %v48 = vunpack.c.l.bf16 %v23
    %v49 = vunpack.c.l.bf16 %v24
    %v50 = vunpack.c.l.bf16 %v25
    %v51 = vunpack.c.l.bf16 %v26
    %v52 = vunpack.c.l.bf16 %v27
    %v53 = vunpack.c.l.bf16 %v28
    %v54 = vunpack.c.l.bf16 %v29
    %v55 = vunpack.c.l.bf16 %v30
    %v56 = vunpack.c.l.bf16 %v31
    %v57 = vunpack.c.l.bf16 %v32
    %v58 = vunpack.c.l.bf16 %v33
    %v59 = vunpack.c.l.bf16 %v34
    %v60 = vunpack.c.l.bf16 %v35
    %v61 = vunpack.c.l.bf16 %v36
    %v62 = vunpack.c.l.bf16 %v37
    %v63 = vunpack.c.l.bf16 %v38
    %v64 = vunpack.c.l.bf16 %v39
    %v65 = vunpack.c.l.bf16 %v40
    %v66 = vunpack.c.l.bf16 %v41
    %v67 = vunpack.c.l.bf16 %v42
    %v68 = vunpack.c.l.bf16 %v43
    %v69 = vunpack.c.l.bf16 %v44
    %v70 = vunpack.c.l.bf16 %v45
    %v71 = vunpack.c.l.bf16 %v46
    %v72 = vld [vmem:[%s1] sm:$0x1]
    %v73 = vunpack.c.l.bf16 %v72
    %v74 = vld [vmem:[%s2] sm:$0x1]
    %76 = vset.pattern.permute.xlu0 0
    %77 = vperm.xlu0 %76, %v47
    %v78 = vpop.permute.xlu0 %77
    %81 = vset.pattern.permute.xlu0 0
    %82 = vperm.xlu0 %81, %v48
    %v83 = vpop.permute.xlu0 %82
    %86 = vset.pattern.permute.xlu0 0
    %87 = vperm.xlu0 %86, %v49
    %v88 = vpop.permute.xlu0 %87
    %91 = vset.pattern.permute.xlu0 0
    %92 = vperm.xlu0 %91, %v50
    %v93 = vpop.permute.xlu0 %92
    %96 = vset.pattern.permute.xlu0 0
    %97 = vperm.xlu0 %96, %v51
    %v98 = vpop.permute.xlu0 %97
    %101 = vset.pattern.permute.xlu0 0
    %102 = vperm.xlu0 %101, %v52
    %v103 = vpop.permute.xlu0 %102
    %106 = vset.pattern.permute.xlu0 0
    %107 = vperm.xlu0 %106, %v53
    %v108 = vpop.permute.xlu0 %107
    %111 = vset.pattern.permute.xlu0 0
    %112 = vperm.xlu0 %111, %v54
    %v113 = vpop.permute.xlu0 %112
    %116 = vset.pattern.permute.xlu0 0
    %117 = vperm.xlu0 %116, %v55
    %v118 = vpop.permute.xlu0 %117
    %121 = vset.pattern.permute.xlu0 0
    %122 = vperm.xlu0 %121, %v56
    %v123 = vpop.permute.xlu0 %122
    %126 = vset.pattern.permute.xlu0 0
    %127 = vperm.xlu0 %126, %v57
    %v128 = vpop.permute.xlu0 %127
    %131 = vset.pattern.permute.xlu0 0
    %132 = vperm.xlu0 %131, %v58
    %v133 = vpop.permute.xlu0 %132
    %136 = vset.pattern.permute.xlu0 0
    %137 = vperm.xlu0 %136, %v59
    %v138 = vpop.permute.xlu0 %137
    %141 = vset.pattern.permute.xlu0 0
    %142 = vperm.xlu0 %141, %v60
    %v143 = vpop.permute.xlu0 %142
    %146 = vset.pattern.permute.xlu0 0
    %147 = vperm.xlu0 %146, %v61
    %v148 = vpop.permute.xlu0 %147
    %151 = vset.pattern.permute.xlu0 0
    %152 = vperm.xlu0 %151, %v62
    %v153 = vpop.permute.xlu0 %152
    %156 = vset.pattern.permute.xlu0 0
    %157 = vperm.xlu0 %156, %v63
    %v158 = vpop.permute.xlu0 %157
    %161 = vset.pattern.permute.xlu0 0
    %162 = vperm.xlu0 %161, %v64
    %v163 = vpop.permute.xlu0 %162
    %166 = vset.pattern.permute.xlu0 0
    %167 = vperm.xlu0 %166, %v65
    %v168 = vpop.permute.xlu0 %167
    %171 = vset.pattern.permute.xlu0 0
    %172 = vperm.xlu0 %171, %v66
    %v173 = vpop.permute.xlu0 %172
    %176 = vset.pattern.permute.xlu0 0
    %177 = vperm.xlu0 %176, %v67
    %v178 = vpop.permute.xlu0 %177
    %181 = vset.pattern.permute.xlu0 0
    %182 = vperm.xlu0 %181, %v68
    %v183 = vpop.permute.xlu0 %182
    %186 = vset.pattern.permute.xlu0 0
    %187 = vperm.xlu0 %186, %v69
    %v188 = vpop.permute.xlu0 %187
    %191 = vset.pattern.permute.xlu0 0
    %192 = vperm.xlu0 %191, %v70
    %v193 = vpop.permute.xlu0 %192
    %196 = vset.pattern.permute.xlu0 0
    %197 = vperm.xlu0 %196, %v71
    %v198 = vpop.permute.xlu0 %197
    %v200 = vlaneseq
    %v201 = vshrl.u32 %v200, 7
    %v202 = vsub.s32 0, %v201
    %v203 = vrot.slane %v73, %v202
    %v204 = vmul.f32 %v78, %v203
    %v205 = vmul.f32 %v83, %v203
    %v206 = vmul.f32 %v88, %v203
    %v207 = vmul.f32 %v93, %v203
    %v208 = vmul.f32 %v98, %v203
    %v209 = vmul.f32 %v103, %v203
    %v210 = vmul.f32 %v108, %v203
    %v211 = vmul.f32 %v113, %v203
    %v212 = vmul.f32 %v118, %v203
    %v213 = vmul.f32 %v123, %v203
    %v214 = vmul.f32 %v128, %v203
    %v215 = vmul.f32 %v133, %v203
    %v216 = vmul.f32 %v138, %v203
    %v217 = vmul.f32 %v143, %v203
    %v218 = vmul.f32 %v148, %v203
    %v219 = vmul.f32 %v153, %v203
    %v220 = vmul.f32 %v158, %v203
    %v221 = vmul.f32 %v163, %v203
    %v222 = vmul.f32 %v168, %v203
    %v223 = vmul.f32 %v173, %v203
    %v224 = vmul.f32 %v178, %v203
    %v225 = vmul.f32 %v183, %v203
    %v226 = vmul.f32 %v188, %v203
    %v227 = vmul.f32 %v193, %v203
    %v228 = vmul.f32 %v198, %v203
    %v230 = vlaneseq
    %v231 = vshrl.u32 %v230, 7
    %v232 = vsub.s32 0, %v231
    %v233 = vrot.slane %v74, %v232
    %v235 = vadd.f32 %v233, %v204
    %v236 = vadd.f32 %v233, %v205
    %v237 = vadd.f32 %v233, %v206
    %v238 = vadd.f32 %v233, %v207
    %v239 = vadd.f32 %v233, %v208
    %v240 = vadd.f32 %v233, %v209
    %v241 = vadd.f32 %v233, %v210
    %v242 = vadd.f32 %v233, %v211
    %v243 = vadd.f32 %v233, %v212
    %v244 = vadd.f32 %v233, %v213
    %v245 = vadd.f32 %v233, %v214
    %v246 = vadd.f32 %v233, %v215
    %v247 = vadd.f32 %v233, %v216
    %v248 = vadd.f32 %v233, %v217
    %v249 = vadd.f32 %v233, %v218
    %v250 = vadd.f32 %v233, %v219
    %v251 = vadd.f32 %v233, %v220
    %v252 = vadd.f32 %v233, %v221
    %v253 = vadd.f32 %v233, %v222
    %v254 = vadd.f32 %v233, %v223
    %v255 = vadd.f32 %v233, %v224
    %v256 = vadd.f32 %v233, %v225
    %v257 = vadd.f32 %v233, %v226
    %v258 = vadd.f32 %v233, %v227
    %v259 = vadd.f32 %v233, %v228
    %260 = vset.pattern.permute.xlu0 1
    %261 = vperm.xlu0 %260, %v47
    %v262 = vpop.permute.xlu0 %261
    %264 = vset.pattern.permute.xlu0 1
    %265 = vperm.xlu0 %264, %v48
    %v266 = vpop.permute.xlu0 %265
    %268 = vset.pattern.permute.xlu0 1
    %269 = vperm.xlu0 %268, %v49
    %v270 = vpop.permute.xlu0 %269
    %272 = vset.pattern.permute.xlu0 1
    %273 = vperm.xlu0 %272, %v50
    %v274 = vpop.permute.xlu0 %273
    %276 = vset.pattern.permute.xlu0 1
    %277 = vperm.xlu0 %276, %v51
    %v278 = vpop.permute.xlu0 %277
    %280 = vset.pattern.permute.xlu0 1
    %281 = vperm.xlu0 %280, %v52
    %v282 = vpop.permute.xlu0 %281
    %284 = vset.pattern.permute.xlu0 1
    %285 = vperm.xlu0 %284, %v53
    %v286 = vpop.permute.xlu0 %285
    %288 = vset.pattern.permute.xlu0 1
    %289 = vperm.xlu0 %288, %v54
    %v290 = vpop.permute.xlu0 %289
    %292 = vset.pattern.permute.xlu0 1
    %293 = vperm.xlu0 %292, %v55
    %v294 = vpop.permute.xlu0 %293
    %296 = vset.pattern.permute.xlu0 1
    %297 = vperm.xlu0 %296, %v56
    %v298 = vpop.permute.xlu0 %297
    %300 = vset.pattern.permute.xlu0 1
    %301 = vperm.xlu0 %300, %v57
    %v302 = vpop.permute.xlu0 %301
    %304 = vset.pattern.permute.xlu0 1
    %305 = vperm.xlu0 %304, %v58
    %v306 = vpop.permute.xlu0 %305
    %308 = vset.pattern.permute.xlu0 1
    %309 = vperm.xlu0 %308, %v59
    %v310 = vpop.permute.xlu0 %309
    %312 = vset.pattern.permute.xlu0 1
    %313 = vperm.xlu0 %312, %v60
    %v314 = vpop.permute.xlu0 %313
    %316 = vset.pattern.permute.xlu0 1
    %317 = vperm.xlu0 %316, %v61
    %v318 = vpop.permute.xlu0 %317
    %320 = vset.pattern.permute.xlu0 1
    %321 = vperm.xlu0 %320, %v62
    %v322 = vpop.permute.xlu0 %321
    %324 = vset.pattern.permute.xlu0 1
    %325 = vperm.xlu0 %324, %v63
    %v326 = vpop.permute.xlu0 %325
    %328 = vset.pattern.permute.xlu0 1
    %329 = vperm.xlu0 %328, %v64
    %v330 = vpop.permute.xlu0 %329
    %332 = vset.pattern.permute.xlu0 1
    %333 = vperm.xlu0 %332, %v65
    %v334 = vpop.permute.xlu0 %333
    %336 = vset.pattern.permute.xlu0 1
    %337 = vperm.xlu0 %336, %v66
    %v338 = vpop.permute.xlu0 %337
    %340 = vset.pattern.permute.xlu0 1
    %341 = vperm.xlu0 %340, %v67
    %v342 = vpop.permute.xlu0 %341
    %344 = vset.pattern.permute.xlu0 1
    %345 = vperm.xlu0 %344, %v68
    %v346 = vpop.permute.xlu0 %345
    %348 = vset.pattern.permute.xlu0 1
    %349 = vperm.xlu0 %348, %v69
    %v350 = vpop.permute.xlu0 %349
    %352 = vset.pattern.permute.xlu0 1
    %353 = vperm.xlu0 %352, %v70
    %v354 = vpop.permute.xlu0 %353
    %356 = vset.pattern.permute.xlu0 1
    %357 = vperm.xlu0 %356, %v71
    %v358 = vpop.permute.xlu0 %357
    %v360 = vlaneseq
    %v361 = vshrl.u32 %v360, 7
    %v362 = vsub.s32 1, %v361
    %v363 = vrot.slane %v73, %v362
    %v364 = vmul.f32 %v262, %v363
    %v365 = vmul.f32 %v266, %v363
    %v366 = vmul.f32 %v270, %v363
    %v367 = vmul.f32 %v274, %v363
    %v368 = vmul.f32 %v278, %v363
    %v369 = vmul.f32 %v282, %v363
    %v370 = vmul.f32 %v286, %v363
    %v371 = vmul.f32 %v290, %v363
    %v372 = vmul.f32 %v294, %v363
    %v373 = vmul.f32 %v298, %v363
    %v374 = vmul.f32 %v302, %v363
    %v375 = vmul.f32 %v306, %v363
    %v376 = vmul.f32 %v310, %v363
    %v377 = vmul.f32 %v314, %v363
    %v378 = vmul.f32 %v318, %v363
    %v379 = vmul.f32 %v322, %v363
    %v380 = vmul.f32 %v326, %v363
    %v381 = vmul.f32 %v330, %v363
    %v382 = vmul.f32 %v334, %v363
    %v383 = vmul.f32 %v338, %v363
    %v384 = vmul.f32 %v342, %v363
    %v385 = vmul.f32 %v346, %v363
    %v386 = vmul.f32 %v350, %v363
    %v387 = vmul.f32 %v354, %v363
    %v388 = vmul.f32 %v358, %v363
    %v389 = vadd.f32 %v235, %v364
    %v390 = vadd.f32 %v236, %v365
    %v391 = vadd.f32 %v237, %v366
    %v392 = vadd.f32 %v238, %v367
    %v393 = vadd.f32 %v239, %v368
    %v394 = vadd.f32 %v240, %v369
    %v395 = vadd.f32 %v241, %v370
    %v396 = vadd.f32 %v242, %v371
    %v397 = vadd.f32 %v243, %v372
    %v398 = vadd.f32 %v244, %v373
    %v399 = vadd.f32 %v245, %v374
    %v400 = vadd.f32 %v246, %v375
    %v401 = vadd.f32 %v247, %v376
    %v402 = vadd.f32 %v248, %v377
    %v403 = vadd.f32 %v249, %v378
    %v404 = vadd.f32 %v250, %v379
    %v405 = vadd.f32 %v251, %v380
    %v406 = vadd.f32 %v252, %v381
    %v407 = vadd.f32 %v253, %v382
    %v408 = vadd.f32 %v254, %v383
    %v409 = vadd.f32 %v255, %v384
    %v410 = vadd.f32 %v256, %v385
    %v411 = vadd.f32 %v257, %v386
    %v412 = vadd.f32 %v258, %v387
    %v413 = vadd.f32 %v259, %v388
    %v414 = vmax.f32 %v389, 0.0
    %v415 = vmax.f32 %v390, 0.0
    %v416 = vmax.f32 %v391, 0.0
    %v417 = vmax.f32 %v392, 0.0
    %v418 = vmax.f32 %v393, 0.0
    %v419 = vmax.f32 %v394, 0.0
    %v420 = vmax.f32 %v395, 0.0
    %v421 = vmax.f32 %v396, 0.0
    %v422 = vmax.f32 %v397, 0.0
    %v423 = vmax.f32 %v398, 0.0
    %v424 = vmax.f32 %v399, 0.0
    %v425 = vmax.f32 %v400, 0.0
    %v426 = vmax.f32 %v401, 0.0
    %v427 = vmax.f32 %v402, 0.0
    %v428 = vmax.f32 %v403, 0.0
    %v429 = vmax.f32 %v404, 0.0
    %v430 = vmax.f32 %v405, 0.0
    %v431 = vmax.f32 %v406, 0.0
    %v432 = vmax.f32 %v407, 0.0
    %v433 = vmax.f32 %v408, 0.0
    %v434 = vmax.f32 %v409, 0.0
    %v435 = vmax.f32 %v410, 0.0
    %v436 = vmax.f32 %v411, 0.0
    %v437 = vmax.f32 %v412, 0.0
    %v438 = vmax.f32 %v413, 0.0
    %v439 = vpack.c.bf16 %v415, %v414
    %v440 = vpack.c.bf16 %v417, %v416
    %v441 = vpack.c.bf16 %v419, %v418
    %v442 = vpack.c.bf16 %v421, %v420
    %v443 = vpack.c.bf16 %v423, %v422
    %v444 = vpack.c.bf16 %v425, %v424
    %v445 = vpack.c.bf16 %v427, %v426
    %v446 = vpack.c.bf16 %v429, %v428
    %v447 = vpack.c.bf16 %v431, %v430
    %v448 = vpack.c.bf16 %v433, %v432
    %v449 = vpack.c.bf16 %v435, %v434
    %v450 = vpack.c.bf16 %v437, %v436
    %v451 = vpack.c.bf16 %v438, %v438
    %v452 = vld [vmem:[%s3] sm:$0xf]
    %v453 = vld [vmem:[%s3 + $0x4] sm:$0xf]
    %v454 = vld [vmem:[%s3 + $0x8] sm:$0xf]
    %v455 = vld [vmem:[%s3 + $0xc] sm:$0xf]
    %v456 = vld [vmem:[%s3 + $0x10] sm:$0xf]
    %v457 = vld [vmem:[%s3 + $0x14] sm:$0xf]
    %v458 = vld [vmem:[%s3 + $0x18] sm:$0xf]
    %v459 = vld [vmem:[%s3 + $0x1c] sm:$0xf]
    %v460 = vld [vmem:[%s3 + $0x20] sm:$0xf]
    %v461 = vld [vmem:[%s3 + $0x24] sm:$0xf]
    %v462 = vld [vmem:[%s3 + $0x28] sm:$0xf]
    %v463 = vld [vmem:[%s3 + $0x2c] sm:$0xf]
    %v464 = vld [vmem:[%s3 + $0x30] sm:$0xf]
    %v465 = vld [vmem:[%s3 + $0x34] sm:$0xf]
    %v466 = vld [vmem:[%s3 + $0x38] sm:$0xf]
    %v467 = vld [vmem:[%s3 + $0x3c] sm:$0xf]
    %v468 = vld [vmem:[%s4] sm:$0x1]
    %v470 = vlaneseq
    %v471 = vshrl.u32 %v470, 7
    %v472 = vsub.s32 0, %v471
    %v473 = vrot.slane %v468, %v472
    %v491 = vunpack.c.l.b16 %v452
    %v492 = vunpack.c.l.b16 %v453
    %v493 = vunpack.c.l.b16 %v454
    %v494 = vunpack.c.l.b16 %v455
    %v495 = vunpack.c.l.b16 %v456
    %v496 = vunpack.c.l.b16 %v457
    %v497 = vunpack.c.l.b16 %v458
    %v498 = vunpack.c.l.b16 %v459
    %v499 = vunpack.c.l.b16 %v460
    %v500 = vunpack.c.l.b16 %v461
    %v501 = vunpack.c.l.b16 %v462
    %v502 = vunpack.c.l.b16 %v463
    %v503 = vunpack.c.l.b16 %v464
    %v504 = vunpack.c.l.b16 %v465
    %v505 = vunpack.c.l.b16 %v466
    %v506 = vunpack.c.l.b16 %v467
    %v507 = vpack.c.b16 %v492, %v491
    %v508 = vpack.c.b16 %v494, %v493
    %v509 = vpack.c.b16 %v496, %v495
    %v510 = vpack.c.b16 %v498, %v497
    %v511 = vpack.c.b16 %v500, %v499
    %v512 = vpack.c.b16 %v502, %v501
    %v513 = vpack.c.b16 %v504, %v503
    %v514 = vpack.c.b16 %v506, %v505
    %523 = vmatprep.subr.bf16.mxu0 0
    %524 = vmatpush1.bf16.msra.mxu0 %v507
    %525 = vmatprep.subr.bf16.mxu0 0
    %526 = vmatpush1.bf16.msra.mxu0 %v508
    %527 = vmatprep.subr.bf16.mxu0 0
    %528 = vmatpush1.bf16.msra.mxu0 %v509
    %529 = vmatprep.subr.bf16.mxu0 0
    %530 = vmatpush1.bf16.msra.mxu0 %v510
    %531 = vmatprep.subr.bf16.mxu0 0
    %532 = vmatpush1.bf16.msra.mxu0 %v511
    %533 = vmatprep.subr.bf16.mxu0 0
    %534 = vmatpush1.bf16.msra.mxu0 %v512
    %535 = vmatprep.subr.bf16.mxu0 0
    %536 = vmatpush1.bf16.msra.mxu0 %v513
    %537 = vmatprep.subr.bf16.mxu0 0
    %538 = vmatpush1.bf16.msra.mxu0 %v514
    %539 = vmatprep.subr.bf16.mxu0 0
    %540 = vmatpush1.bf16.msra.mxu0 0
    %541 = vmatprep.subr.bf16.mxu0 0
    %542 = vmatpush1.bf16.msra.mxu0 0
    %543 = vmatprep.subr.bf16.mxu0 0
    %544 = vmatpush1.bf16.msra.mxu0 0
    %545 = vmatprep.subr.bf16.mxu0 0
    %546 = vmatpush1.bf16.msra.mxu0 0
    %547 = vmatprep.subr.bf16.mxu0 0
    %548 = vmatpush1.bf16.msra.mxu0 0
    %549 = vmatprep.subr.bf16.mxu0 0
    %550 = vmatpush1.bf16.msra.mxu0 0
    %551 = vmatprep.subr.bf16.mxu0 0
    %552 = vmatpush1.bf16.msra.mxu0 0
    %553 = vmatprep.subr.bf16.mxu0 0
    %554 = vmatpush1.bf16.msra.mxu0 0
    %555 = vmatprep.mubr.bf16.mxu0 0
    %556 = vmatmul.mubr.bf16.gmra.mrb[0].mxu0 %v439
    %v557 = vpop.f32.mrb[0].mxu0
    %v558 = vadd.f32 %v473, %v557
    %v559 = vpop.f32.mrb[0].mxu0
    %v560 = vpop.f32.mrb[0].mxu0
    %v561 = vadd.f32 %v473, %v560
    %v562 = vpop.f32.mrb[0].mxu0
    %563 = vmatprep.mubr.bf16.mxu0 0
    %564 = vmatmul.mubr.bf16.gmra.mrb[0].mxu0 %v440
    %v565 = vpop.f32.mrb[0].mxu0
    %v566 = vadd.f32 %v473, %v565
    %v567 = vpop.f32.mrb[0].mxu0
    %v568 = vpop.f32.mrb[0].mxu0
    %v569 = vadd.f32 %v473, %v568
    %v570 = vpop.f32.mrb[0].mxu0
    %571 = vmatprep.mubr.bf16.mxu0 0
    %572 = vmatmul.mubr.bf16.gmra.mrb[0].mxu0 %v441
    %v573 = vpop.f32.mrb[0].mxu0
    %v574 = vadd.f32 %v473, %v573
    %v575 = vpop.f32.mrb[0].mxu0
    %v576 = vpop.f32.mrb[0].mxu0
    %v577 = vadd.f32 %v473, %v576
    %v578 = vpop.f32.mrb[0].mxu0
    %579 = vmatprep.mubr.bf16.mxu0 0
    %580 = vmatmul.mubr.bf16.gmra.mrb[0].mxu0 %v442
    %v581 = vpop.f32.mrb[0].mxu0
    %v582 = vadd.f32 %v473, %v581
    %v583 = vpop.f32.mrb[0].mxu0
    %v584 = vpop.f32.mrb[0].mxu0
    %v585 = vadd.f32 %v473, %v584
    %v586 = vpop.f32.mrb[0].mxu0
    %587 = vmatprep.mubr.bf16.mxu0 0
    %588 = vmatmul.mubr.bf16.gmra.mrb[0].mxu0 %v443
    %v589 = vpop.f32.mrb[0].mxu0
    %v590 = vadd.f32 %v473, %v589
    %v591 = vpop.f32.mrb[0].mxu0
    %v592 = vpop.f32.mrb[0].mxu0
    %v593 = vadd.f32 %v473, %v592
    %v594 = vpop.f32.mrb[0].mxu0
    %595 = vmatprep.mubr.bf16.mxu0 0
    %596 = vmatmul.mubr.bf16.gmra.mrb[0].mxu0 %v444
    %v597 = vpop.f32.mrb[0].mxu0
    %v598 = vadd.f32 %v473, %v597
    %v599 = vpop.f32.mrb[0].mxu0
    %v600 = vpop.f32.mrb[0].mxu0
    %v601 = vadd.f32 %v473, %v600
    %v602 = vpop.f32.mrb[0].mxu0
    %603 = vmatprep.mubr.bf16.mxu0 0
    %604 = vmatmul.mubr.bf16.gmra.mrb[0].mxu0 %v445
    %v605 = vpop.f32.mrb[0].mxu0
    %v606 = vadd.f32 %v473, %v605
    %v607 = vpop.f32.mrb[0].mxu0
    %v608 = vpop.f32.mrb[0].mxu0
    %v609 = vadd.f32 %v473, %v608
    %v610 = vpop.f32.mrb[0].mxu0
    %611 = vmatprep.mubr.bf16.mxu0 0
    %612 = vmatmul.mubr.bf16.gmra.mrb[0].mxu0 %v446
    %v613 = vpop.f32.mrb[0].mxu0
    %v614 = vadd.f32 %v473, %v613
    %v615 = vpop.f32.mrb[0].mxu0
    %v616 = vpop.f32.mrb[0].mxu0
    %v617 = vadd.f32 %v473, %v616
    %v618 = vpop.f32.mrb[0].mxu0
    %619 = vmatprep.mubr.bf16.mxu0 0
    %620 = vmatmul.mubr.bf16.gmra.mrb[0].mxu0 %v447
    %v621 = vpop.f32.mrb[0].mxu0
    %v622 = vadd.f32 %v473, %v621
    %v623 = vpop.f32.mrb[0].mxu0
    %v624 = vpop.f32.mrb[0].mxu0
    %v625 = vadd.f32 %v473, %v624
    %v626 = vpop.f32.mrb[0].mxu0
    %627 = vmatprep.mubr.bf16.mxu0 0
    %628 = vmatmul.mubr.bf16.gmra.mrb[0].mxu0 %v448
    %v629 = vpop.f32.mrb[0].mxu0
    %v630 = vadd.f32 %v473, %v629
    %v631 = vpop.f32.mrb[0].mxu0
    %v632 = vpop.f32.mrb[0].mxu0
    %v633 = vadd.f32 %v473, %v632
    %v634 = vpop.f32.mrb[0].mxu0
    %635 = vmatprep.mubr.bf16.mxu0 0
    %636 = vmatmul.mubr.bf16.gmra.mrb[0].mxu0 %v449
    %v637 = vpop.f32.mrb[0].mxu0
    %v638 = vadd.f32 %v473, %v637
    %v639 = vpop.f32.mrb[0].mxu0
    %v640 = vpop.f32.mrb[0].mxu0
    %v641 = vadd.f32 %v473, %v640
    %v642 = vpop.f32.mrb[0].mxu0
    %643 = vmatprep.mubr.bf16.mxu0 0
    %644 = vmatmul.mubr.bf16.gmra.mrb[0].mxu0 %v450
    %v645 = vpop.f32.mrb[0].mxu0
    %v646 = vadd.f32 %v473, %v645
    %v647 = vpop.f32.mrb[0].mxu0
    %v648 = vpop.f32.mrb[0].mxu0
    %v649 = vadd.f32 %v473, %v648
    %v650 = vpop.f32.mrb[0].mxu0
    %651 = vmatprep.mubr.bf16.mxu0 0
    %652 = vmatmul.mubr.bf16.gmra.mrb[0].mxu0 %v451
    %v653 = vpop.f32.mrb[0].mxu0
    %v654 = vadd.f32 %v473, %v653
    %v655 = vpop.f32.mrb[0].mxu0
    %v656 = vpop.f32.mrb[0].mxu0
    %v657 = vpop.f32.mrb[0].mxu0
    %658 = vdwg.mxu0
    %659 = vst [vmem:[#allocation2] sm:$0xff] %v558
    %660 = vst [vmem:[#allocation2 + $0x8] sm:$0xff] %v561
    %661 = vst [vmem:[#allocation2 + $0x10] sm:$0xff] %v566
    %662 = vst [vmem:[#allocation2 + $0x18] sm:$0xff] %v569
    %663 = vst [vmem:[#allocation2 + $0x20] sm:$0xff] %v574
    %664 = vst [vmem:[#allocation2 + $0x28] sm:$0xff] %v577
    %665 = vst [vmem:[#allocation2 + $0x30] sm:$0xff] %v582
    %666 = vst [vmem:[#allocation2 + $0x38] sm:$0xff] %v585
    %667 = vst [vmem:[#allocation2 + $0x40] sm:$0xff] %v590
    %668 = vst [vmem:[#allocation2 + $0x48] sm:$0xff] %v593
    %669 = vst [vmem:[#allocation2 + $0x50] sm:$0xff] %v598
    %670 = vst [vmem:[#allocation2 + $0x58] sm:$0xff] %v601
    %671 = vst [vmem:[#allocation2 + $0x60] sm:$0xff] %v606
    %672 = vst [vmem:[#allocation2 + $0x68] sm:$0xff] %v609
    %673 = vst [vmem:[#allocation2 + $0x70] sm:$0xff] %v614
    %674 = vst [vmem:[#allocation2 + $0x78] sm:$0xff] %v617
    %675 = vst [vmem:[#allocation2 + $0x80] sm:$0xff] %v622
    %676 = vst [vmem:[#allocation2 + $0x88] sm:$0xff] %v625
    %677 = vst [vmem:[#allocation2 + $0x90] sm:$0xff] %v630
    %678 = vst [vmem:[#allocation2 + $0x98] sm:$0xff] %v633
    %679 = vst [vmem:[#allocation2 + $0xa0] sm:$0xff] %v638
    %680 = vst [vmem:[#allocation2 + $0xa8] sm:$0xff] %v641
    %681 = vst [vmem:[#allocation2 + $0xb0] sm:$0xff] %v646
    %682 = vst [vmem:[#allocation2 + $0xb8] sm:$0xff] %v649
    %683 = vst [vmem:[#allocation2 + $0xc0] sm:$0xff] %v654
    // Predicated region
    $region22: #{tpu_custom_call.1} parent=1 // pred_check
      _
    $region23: #{tpu_custom_call.1} parent=1 // pred_check_branch
      %685 = sbr.rel (0) target = $region25
    $region24: #{tpu_custom_call.1} parent=1 // pred_region
      %s687 = ssub.s32 3200, 3200
      %688 = vsyncadd [#allocation3], %s687
      %s689 = sshll.u32 [#allocation2], 4
      %s690 = int_to_ptr.vmem [resolvable:$true] %s689
      %695 = dma.vmem_to_hbm [thread:$0]  %s690, 3200, %s5, [#allocation3], 128, 128, 8
    $region25: #{tpu_custom_call.1} parent=1 // pred_fallthru
      _
    // Predicated region
    $region26: #{tpu_custom_call.1} parent=1 // pred_check
      _
    $region27: #{tpu_custom_call.1} parent=1 // pred_check_branch
      %697 = sbr.rel (0) target = $region29
    $region28: #{tpu_custom_call.1} parent=1 // pred_region
      %698 = dma.done [#allocation3], 3200
    $region29: #{tpu_custom_call.1} parent=1 // pred_fallthru
      _
    %699 = vsyncpa [#allocation3], 1

</llo_original>
